<compile_context>
chip_gen: v7x
topology: tpu7x:2x2x1
jax: 0.10.0
libtpu: 0.0.40
codegen_flags: <defaults>
</compile_context>

<pallas_src>
import functools
import math

import jax
import jax.numpy as jnp
from jax.experimental import pallas as pl
from jax.experimental.pallas import tpu as pltpu


def _round_up(x, m):
    return ((x + m - 1) // m) * m


def _make_lm_head_kernel(eps: float):
    inv_sqrt2 = 1.0 / math.sqrt(2.0)

    def kernel(x_ref, wd_ref, bd_ref, g_ref, beta_ref, wdec_ref, bias_ref,
               o_ref, hn_ref):
        # hn_ref: (TM, D) f32 scratch holding the LayerNorm output for this
        # token tile.  Computed once per token tile (vocab index 0) and reused
        # across all vocab tiles of the inner grid axis.
        @pl.when(pl.program_id(1) == 0)
        def _():
            x = x_ref[...].astype(wd_ref.dtype)
            # dense: Linear(d_model, d_model) with bias, f32 accumulation
            h = jnp.dot(x, wd_ref[...], preferred_element_type=jnp.float32)
            h = h + bd_ref[...].astype(jnp.float32)
            # ESM-style gelu: x * 0.5 * (1 + erf(x / sqrt(2)))
            h = h * 0.5 * (1.0 + jax.lax.erf(h * jnp.float32(inv_sqrt2)))
            # LayerNorm over d_model
            mean = jnp.mean(h, axis=-1, keepdims=True)
            var = jnp.mean(jnp.square(h - mean), axis=-1, keepdims=True)
            hn = (h - mean) * jax.lax.rsqrt(var + jnp.float32(eps))
            hn = hn * g_ref[...].astype(jnp.float32) + beta_ref[...].astype(jnp.float32)
            hn_ref[...] = hn

        # decoder: Linear(d_model, vocab_tile, bias=False) + vocab bias slab
        logits = jnp.dot(hn_ref[...].astype(wdec_ref.dtype), wdec_ref[...],
                         preferred_element_type=jnp.float32)
        logits = logits + bias_ref[...].astype(jnp.float32)
        o_ref[...] = logits.astype(o_ref.dtype)

    return kernel


@functools.partial(jax.jit,
                   static_argnames=("eps", "token_tile", "vocab_tile", "out_dtype"))
def t5_lm_head(features, params, *, eps=1e-6, token_tile=256, vocab_tile=2048,
               out_dtype=None):
    """features: [B, S, D] -> logits [B, S, V]."""
    B, S, D = features.shape
    V = params["decoder_w"].shape[1]
    N = B * S
    if out_dtype is None:
        out_dtype = features.dtype

    x = features.reshape(N, D)

    # Token tiling: large tiles keep the MXU fed and amortize weight DMAs;
    # clamp (to a multiple of 8 sublanes) for tiny inputs to avoid huge pads.
    TM = min(token_tile, _round_up(N, 8))
    Np = _round_up(N, TM)
    if Np != N:
        x = jnp.pad(x, ((0, Np - N), (0, 0)))

    # Vocab tiling: stream (D, TN) decoder-weight slabs so real vocab sizes
    # never blow the VMEM budget (64 MiB physical on v7x).
    if V <= vocab_tile:
        TN, Vp = V, V
        wdec, vbias = params["decoder_w"], params["vocab_bias"]
    else:
        TN = vocab_tile  # multiple of 128 -> lane-dense unmasked stores
        Vp = _round_up(V, TN)
        wdec = jnp.pad(params["decoder_w"], ((0, 0), (0, Vp - V)))
        vbias = jnp.pad(params["vocab_bias"], ((0, 0), (0, Vp - V)))

    kernel = _make_lm_head_kernel(eps)

    out = pl.pallas_call(
        kernel,
        out_shape=jax.ShapeDtypeStruct((Np, Vp), out_dtype),
        grid_spec=pltpu.PrefetchScalarGridSpec(
            num_scalar_prefetch=0,
            grid=(Np // TM, Vp // TN),
            in_specs=[
                pl.BlockSpec((TM, D), lambda i, j: (i, 0)),   # token tile
                pl.BlockSpec((D, D), lambda i, j: (0, 0)),    # dense weight [in,out]
                pl.BlockSpec((1, D), lambda i, j: (0, 0)),    # dense bias
                pl.BlockSpec((1, D), lambda i, j: (0, 0)),    # layernorm gamma
                pl.BlockSpec((1, D), lambda i, j: (0, 0)),    # layernorm beta
                pl.BlockSpec((D, TN), lambda i, j: (0, j)),   # decoder weight slab
                pl.BlockSpec((1, TN), lambda i, j: (0, j)),   # vocab bias slab
            ],
            out_specs=pl.BlockSpec((TM, TN), lambda i, j: (i, j)),
            scratch_shapes=[pltpu.VMEM((TM, D), jnp.float32)],
        ),
        compiler_params=pltpu.CompilerParams(
            # Token axis shards across TensorCores (v7x megacore); vocab axis
            # must stay "arbitrary" because the hn scratch is reused across it.
            dimension_semantics=("parallel", "arbitrary"),
            vmem_limit_bytes=64 * 1024 * 1024,
        ),
    )(x, params["dense_w"], params["dense_b"], params["ln_g"], params["ln_b"],
      wdec, vbias)

    return out[:N, :V].reshape(B, S, V)


def init_params(key, d_model, vocab_size, dtype=jnp.float32):
    """Deterministic synthetic parameters matching T5LMHead's shapes.
    (PyTorch Linear stores [out, in]; we store transposed [in, out].)
    Pass dtype=jnp.bfloat16 for the fast production path (f32 accumulation is
    kept inside the kernel)."""
    k1, k2, k3 = jax.random.split(key, 3)
    s_d = 1.0 / math.sqrt(d_model)
    return {
        "dense_w": jax.random.uniform(k1, (d_model, d_model), jnp.float32, -s_d, s_d).astype(dtype),
        "dense_b": jax.random.uniform(k2, (1, d_model), jnp.float32, -s_d, s_d).astype(dtype),
        "ln_g": jnp.ones((1, d_model), dtype),
        "ln_b": jnp.zeros((1, d_model), dtype),
        "decoder_w": jax.random.uniform(k3, (d_model, vocab_size), jnp.float32, -s_d, s_d).astype(dtype),
        "vocab_bias": jnp.zeros((1, vocab_size), dtype),  # nn.Parameter(torch.zeros(vocab_size))
    }


def _reference(features, params, eps):
    x = features.astype(jnp.float32)
    h = x @ params["dense_w"].astype(jnp.float32) + params["dense_b"].astype(jnp.float32)
    h = h * 0.5 * (1.0 + jax.lax.erf(h / math.sqrt(2.0)))
    mean = jnp.mean(h, axis=-1, keepdims=True)
    var = jnp.mean(jnp.square(h - mean), axis=-1, keepdims=True)
    hn = (h - mean) / jnp.sqrt(var + eps)
    hn = hn * params["ln_g"].astype(jnp.float32) + params["ln_b"].astype(jnp.float32)
    return hn @ params["decoder_w"].astype(jnp.float32) + params["vocab_bias"].astype(jnp.float32)


if __name__ == "__main__":
    B, S, D, V = 2, 8, 32, 128  # batch, seq, d_model, vocab_size (per module docstring)
    eps = 1e-6

    key = jax.random.PRNGKey(0)
    k_feat, k_param = jax.random.split(key)
    features = jax.random.normal(k_feat, (B, S, D), jnp.float32)
    params = init_params(k_param, D, V)  # f32 here; use dtype=jnp.bfloat16 in production

    logits = t5_lm_head(features, params, eps=eps)
    logits = jax.block_until_ready(logits)

    ref = _reference(features, params, eps)
    assert logits.shape == (B, S, V)
    assert jnp.allclose(logits, ref, atol=1e-4, rtol=1e-4)

    print("KERNEL_OK")
</pallas_src>

<mosaic_0001>
module attributes {stable_mosaic.version = 11 : i64} {
  func.func @kernel(%arg0: i32, %arg1: i32, %arg2: memref<16x32xf32, #tpu.memory_space<vmem>>, %arg3: memref<32x32xf32, #tpu.memory_space<vmem>>, %arg4: memref<1x32xf32, #tpu.memory_space<vmem>>, %arg5: memref<1x32xf32, #tpu.memory_space<vmem>>, %arg6: memref<1x32xf32, #tpu.memory_space<vmem>>, %arg7: memref<32x128xf32, #tpu.memory_space<vmem>>, %arg8: memref<1x128xf32, #tpu.memory_space<vmem>>, %arg9: memref<16x128xf32, #tpu.memory_space<vmem>>, %arg10: memref<16x32xf32, #tpu.memory_space<vmem>>) attributes {dimension_semantics = [#tpu.dimension_semantics<parallel>, #tpu.dimension_semantics<arbitrary>], iteration_bounds = array<i64: 1, 1>, scalar_prefetch = 0 : i64, scratch_operands = 1 : i64, tpu.core_type = #tpu.core_type<tc>, window_params = [{transform_indices = @transform_0, window_bounds = array<i64: 16, 32>}, {pipeline_mode = #tpu.pipeline_mode<synchronous>, transform_indices = @transform_1, window_bounds = array<i64: 32, 32>}, {pipeline_mode = #tpu.pipeline_mode<synchronous>, transform_indices = @transform_2, window_bounds = array<i64: 1, 32>}, {pipeline_mode = #tpu.pipeline_mode<synchronous>, transform_indices = @transform_3, window_bounds = array<i64: 1, 32>}, {pipeline_mode = #tpu.pipeline_mode<synchronous>, transform_indices = @transform_4, window_bounds = array<i64: 1, 32>}, {transform_indices = @transform_5, window_bounds = array<i64: 32, 128>}, {transform_indices = @transform_6, window_bounds = array<i64: 1, 128>}, {transform_indices = @transform_7, window_bounds = array<i64: 16, 128>}]} {
    %c0_i32 = arith.constant 0 : i32
    %0 = arith.cmpi eq, %arg1, %c0_i32 : i32
    %1 = arith.extui %0 : i1 to i32
    %c0_i32_0 = arith.constant 0 : i32
    %2 = arith.cmpi ne, %1, %c0_i32_0 : i32
    scf.if %2 {
      %c0_8 = arith.constant 0 : index
      %c0_9 = arith.constant 0 : index
      %10 = vector.load %arg2[%c0_8, %c0_9] : memref<16x32xf32, #tpu.memory_space<vmem>>, vector<16x32xf32>
      %c0_10 = arith.constant 0 : index
      %c0_11 = arith.constant 0 : index
      %11 = vector.load %arg3[%c0_10, %c0_11] : memref<32x32xf32, #tpu.memory_space<vmem>>, vector<32x32xf32>
      %cst_12 = arith.constant dense<0.000000e+00> : vector<16x32xf32>
      %12 = tpu.matmul %10, %11, %cst_12 {dimension_numbers = #tpu.dot_dimension_numbers<[1], [0], [0], [1], [0, 0, 1, 1], [], []>} : vector<16x32xf32>, vector<32x32xf32>, vector<16x32xf32> -> vector<16x32xf32>
      %c0_13 = arith.constant 0 : index
      %c0_14 = arith.constant 0 : index
      %13 = vector.load %arg4[%c0_13, %c0_14] : memref<1x32xf32, #tpu.memory_space<vmem>>, vector<1x32xf32>
      %14 = vector.broadcast %13 : vector<1x32xf32> to vector<16x32xf32>
      %15 = arith.addf %12, %14 : vector<16x32xf32>
      %cst_15 = arith.constant 5.000000e-01 : f32
      %16 = vector.broadcast %cst_15 : f32 to vector<16x32xf32>
      %17 = arith.mulf %15, %16 : vector<16x32xf32>
      %cst_16 = arith.constant 0.707106769 : f32
      %18 = vector.broadcast %cst_16 : f32 to vector<16x32xf32>
      %19 = arith.mulf %15, %18 : vector<16x32xf32>
      %20 = math.erf %19 : vector<16x32xf32>
      %cst_17 = arith.constant 1.000000e+00 : f32
      %21 = vector.broadcast %cst_17 : f32 to vector<16x32xf32>
      %22 = arith.addf %21, %20 : vector<16x32xf32>
      %23 = arith.mulf %17, %22 : vector<16x32xf32>
      %cst_18 = arith.constant dense<0.000000e+00> : vector<16xf32>
      %24 = vector.multi_reduction <add>, %23, %cst_18 [1] : vector<16x32xf32> to vector<16xf32>
      %25 = vector.shape_cast %24 : vector<16xf32> to vector<16x1xf32>
      %cst_19 = arith.constant 3.200000e+01 : f32
      %26 = vector.broadcast %cst_19 : f32 to vector<16x1xf32>
      %27 = arith.divf %25, %26 : vector<16x1xf32>
      %28 = vector.broadcast %27 : vector<16x1xf32> to vector<16x32xf32>
      %29 = arith.subf %23, %28 : vector<16x32xf32>
      %30 = arith.mulf %29, %29 : vector<16x32xf32>
      %cst_20 = arith.constant dense<0.000000e+00> : vector<16xf32>
      %31 = vector.multi_reduction <add>, %30, %cst_20 [1] : vector<16x32xf32> to vector<16xf32>
      %32 = vector.shape_cast %31 : vector<16xf32> to vector<16x1xf32>
      %cst_21 = arith.constant 3.200000e+01 : f32
      %33 = vector.broadcast %cst_21 : f32 to vector<16x1xf32>
      %34 = arith.divf %32, %33 : vector<16x1xf32>
      %35 = vector.broadcast %27 : vector<16x1xf32> to vector<16x32xf32>
      %36 = arith.subf %23, %35 : vector<16x32xf32>
      %cst_22 = arith.constant 9.99999997E-7 : f32
      %37 = vector.broadcast %cst_22 : f32 to vector<16x1xf32>
      %38 = arith.addf %34, %37 : vector<16x1xf32>
      %39 = math.rsqrt %38 : vector<16x1xf32>
      %40 = vector.broadcast %39 : vector<16x1xf32> to vector<16x32xf32>
      %41 = arith.mulf %36, %40 : vector<16x32xf32>
      %c0_23 = arith.constant 0 : index
      %c0_24 = arith.constant 0 : index
      %42 = vector.load %arg5[%c0_23, %c0_24] : memref<1x32xf32, #tpu.memory_space<vmem>>, vector<1x32xf32>
      %43 = vector.broadcast %42 : vector<1x32xf32> to vector<16x32xf32>
      %44 = arith.mulf %41, %43 : vector<16x32xf32>
      %c0_25 = arith.constant 0 : index
      %c0_26 = arith.constant 0 : index
      %45 = vector.load %arg6[%c0_25, %c0_26] : memref<1x32xf32, #tpu.memory_space<vmem>>, vector<1x32xf32>
      %46 = vector.broadcast %45 : vector<1x32xf32> to vector<16x32xf32>
      %47 = arith.addf %44, %46 : vector<16x32xf32>
      %c0_27 = arith.constant 0 : index
      %c0_28 = arith.constant 0 : index
      %48 = vector.load %arg10[%c0_27, %c0_28] : memref<16x32xf32, #tpu.memory_space<vmem>>, vector<16x32xf32>
      tpu.vector_store %arg10[%c0_27, %c0_28], %47 {strides = array<i32>} : memref<16x32xf32, #tpu.memory_space<vmem>>, vector<16x32xf32>,
    } else {
    }
    %c0 = arith.constant 0 : index
    %c0_1 = arith.constant 0 : index
    %3 = vector.load %arg10[%c0, %c0_1] : memref<16x32xf32, #tpu.memory_space<vmem>>, vector<16x32xf32>
    %c0_2 = arith.constant 0 : index
    %c0_3 = arith.constant 0 : index
    %4 = vector.load %arg7[%c0_2, %c0_3] : memref<32x128xf32, #tpu.memory_space<vmem>>, vector<32x128xf32>
    %cst = arith.constant dense<0.000000e+00> : vector<16x128xf32>
    %5 = tpu.matmul %3, %4, %cst {dimension_numbers = #tpu.dot_dimension_numbers<[1], [0], [0], [1], [0, 0, 1, 1], [], []>} : vector<16x32xf32>, vector<32x128xf32>, vector<16x128xf32> -> vector<16x128xf32>
    %c0_4 = arith.constant 0 : index
    %c0_5 = arith.constant 0 : index
    %6 = vector.load %arg8[%c0_4, %c0_5] : memref<1x128xf32, #tpu.memory_space<vmem>>, vector<1x128xf32>
    %7 = vector.broadcast %6 : vector<1x128xf32> to vector<16x128xf32>
    %8 = arith.addf %5, %7 : vector<16x128xf32>
    %c0_6 = arith.constant 0 : index
    %c0_7 = arith.constant 0 : index
    %9 = vector.load %arg9[%c0_6, %c0_7] : memref<16x128xf32, #tpu.memory_space<vmem>>, vector<16x128xf32>
    tpu.vector_store %arg9[%c0_6, %c0_7], %8 {strides = array<i32>} : memref<16x128xf32, #tpu.memory_space<vmem>>, vector<16x128xf32>,
    return
  }
  func.func @transform_0(%arg0: i32, %arg1: i32) -> (i32, i32) {
    %c0_i32 = arith.constant 0 : i32
    %c0_i32_0 = arith.constant 0 : i32
    return %arg0, %c0_i32 : i32, i32
  }
  func.func @transform_1(%arg0: i32, %arg1: i32) -> (i32, i32) {
    %c0_i32 = arith.constant 0 : i32
    %c0_i32_0 = arith.constant 0 : i32
    %c0_i32_1 = arith.constant 0 : i32
    return %c0_i32, %c0_i32_0 : i32, i32
  }
  func.func @transform_2(%arg0: i32, %arg1: i32) -> (i32, i32) {
    %c0_i32 = arith.constant 0 : i32
    %c0_i32_0 = arith.constant 0 : i32
    %c0_i32_1 = arith.constant 0 : i32
    return %c0_i32, %c0_i32_0 : i32, i32
  }
  func.func @transform_3(%arg0: i32, %arg1: i32) -> (i32, i32) {
    %c0_i32 = arith.constant 0 : i32
    %c0_i32_0 = arith.constant 0 : i32
    %c0_i32_1 = arith.constant 0 : i32
    return %c0_i32, %c0_i32_0 : i32, i32
  }
  func.func @transform_4(%arg0: i32, %arg1: i32) -> (i32, i32) {
    %c0_i32 = arith.constant 0 : i32
    %c0_i32_0 = arith.constant 0 : i32
    %c0_i32_1 = arith.constant 0 : i32
    return %c0_i32, %c0_i32_0 : i32, i32
  }
  func.func @transform_5(%arg0: i32, %arg1: i32) -> (i32, i32) {
    %c0_i32 = arith.constant 0 : i32
    %c0_i32_0 = arith.constant 0 : i32
    return %c0_i32, %arg1 : i32, i32
  }
  func.func @transform_6(%arg0: i32, %arg1: i32) -> (i32, i32) {
    %c0_i32 = arith.constant 0 : i32
    %c0_i32_0 = arith.constant 0 : i32
    return %c0_i32, %arg1 : i32, i32
  }
  func.func @transform_7(%arg0: i32, %arg1: i32) -> (i32, i32) {
    %c0_i32 = arith.constant 0 : i32
    return %arg0, %arg1 : i32, i32
  }
}

</mosaic_0001>

<llo_original>
// kernel: t5_lm_head.1
$region0: #{t5_lm_head.1}
  #allocation0 [shape = 'u32[]', space=smem, size = 0x4, offset = 0x4, fixed_abs, tag = 'smem constant byte address 0x4 - core index']
  #allocation1 [shape = 'u32[144,128]{1,0:T(1,128)}', space=vmem, size = 0x12000, scoped, tag = 'internal scratch']
  #allocation2 [shape = 'f32[16,32]{1,0:T(8,128)}', space=vmem, size = 0x2000, scoped, tag = 'scratch operand']
  %s0 = inlined_call_operand.hbm [shape: f32[16,32], index: 0, kind: input, shape index: {}]
  %s1 = inlined_call_operand.hbm [shape: f32[32,32], index: 1, kind: input, shape index: {}]
  %s2 = inlined_call_operand.hbm [shape: f32[1,32], index: 2, kind: input, shape index: {}]
  %s3 = inlined_call_operand.hbm [shape: f32[1,32], index: 3, kind: input, shape index: {}]
  %s4 = inlined_call_operand.hbm [shape: f32[1,32], index: 4, kind: input, shape index: {}]
  %s5 = inlined_call_operand.hbm [shape: f32[32,128], index: 5, kind: input, shape index: {}]
  %s6 = inlined_call_operand.hbm [shape: f32[1,128], index: 6, kind: input, shape index: {}]
  %s7 = inlined_call_operand.hbm [shape: f32[16,128], index: 7, kind: output, shape index: {}]
  %s8 = sld [smem:[#allocation0]]
  $region70: #{t5_lm_head.1} parent=0
    _
  %s10 = ssub.s32 1, %s8
  %s11 = scalar_select 0, %s10, %s8
  $region1: #{t5_lm_head.1} parent=0
    #allocation3 [shape = 'u8[8192]{0}', space=vmem, size = 0x2000, scoped, tag = 'input window, operand 0, single buffered']
    #allocation4 [shape = 's32[1]{0}', space=sflag, size = 0x4, scoped, tag = 'scoped memory for t5_lm_head.1']
    #allocation5 [shape = 's32[1]{0}', space=sflag, size = 0x4, scoped, tag = 'scoped memory for t5_lm_head.1']
    #allocation6 [shape = 'u8[16384]{0}', space=vmem, size = 0x4000, scoped, tag = 'input window, operand 1, single buffered']
    #allocation7 [shape = 's32[1]{0}', space=sflag, size = 0x4, scoped, tag = 'scoped memory for t5_lm_head.1']
    #allocation8 [shape = 'u8[512]{0}', space=vmem, size = 0x400, scoped, tag = 'input window, operand 2, single buffered']
    #allocation9 [shape = 'u8[512]{0}', space=vmem, size = 0x400, scoped, tag = 'input window, operand 3, single buffered']
    #allocation10 [shape = 's32[1]{0}', space=sflag, size = 0x4, scoped, tag = 'scoped memory for t5_lm_head.1']
    #allocation11 [shape = 'u8[512]{0}', space=vmem, size = 0x400, scoped, tag = 'input window, operand 4, single buffered']
    #allocation12 [shape = 'u8[16384]{0}', space=vmem, size = 0x4000, scoped, tag = 'input window, operand 5, single buffered']
    #allocation13 [shape = 's32[1]{0}', space=sflag, size = 0x4, scoped, tag = 'scoped memory for t5_lm_head.1']
    #allocation14 [shape = 'u8[512]{0}', space=vmem, size = 0x400, scoped, tag = 'input window, operand 6, single buffered']
    #allocation15 [shape = 'u8[8192]{0}', space=vmem, size = 0x2000, scoped, tag = 'output window, operand 0, single buffered']
    %12 = vsyncpa [#allocation4], 0
    %13 = vsyncpa [#allocation7], 0
    %14 = vsyncpa [#allocation10], 0
    %15 = vsyncpa [#allocation13], 0
    %16 = vsyncpa [#allocation5], 0
    // Predicated region
    $region2: #{t5_lm_head.1} parent=1 // pred_check
      _
    $region3: #{t5_lm_head.1} parent=1 // pred_check_branch
      %18 = sbr.rel (0) target = $region5
    $region4: #{t5_lm_head.1} parent=1 // pred_region
      %s20 = ssub.s32 256, 256
      %21 = vsyncadd [#allocation4], %s20
      %s22 = sshll.u32 [#allocation3], 4
      %s23 = int_to_ptr.vmem [resolvable:$true] %s22
      %28 = dma.hbm_to_vmem [thread:$0]  %s0, 256, %s23, [#allocation4], 128, 128, 8
    $region5: #{t5_lm_head.1} parent=1 // pred_fallthru
      _
    // Predicated region
    $region6: #{t5_lm_head.1} parent=1 // pred_check
      _
    $region7: #{t5_lm_head.1} parent=1 // pred_check_branch
      %30 = sbr.rel (0) target = $region9
    $region8: #{t5_lm_head.1} parent=1 // pred_region
      %s32 = ssub.s32 512, 512
      %33 = vsyncadd [#allocation7], %s32
      %s34 = sshll.u32 [#allocation6], 4
      %s35 = int_to_ptr.vmem [resolvable:$true] %s34
      %40 = dma.hbm_to_vmem [thread:$0]  %s1, 512, %s35, [#allocation7], 128, 128, 8
    $region9: #{t5_lm_head.1} parent=1 // pred_fallthru
      _
    // Predicated region
    $region10: #{t5_lm_head.1} parent=1 // pred_check
      _
    $region11: #{t5_lm_head.1} parent=1 // pred_check_branch
      %42 = sbr.rel (0) target = $region13
    $region12: #{t5_lm_head.1} parent=1 // pred_region
      %s44 = ssub.s32 16, 16
      %45 = vsyncadd [#allocation7], %s44
      %s47 = sshll.u32 [#allocation8], 4
      %s48 = int_to_ptr.vmem [resolvable:$true] %s47
      %50 = dma.hbm_to_vmem [thread:$0]  %s2, 16, %s48, [#allocation7]
    $region13: #{t5_lm_head.1} parent=1 // pred_fallthru
      _
    // Predicated region
    $region14: #{t5_lm_head.1} parent=1 // pred_check
      _
    $region15: #{t5_lm_head.1} parent=1 // pred_check_branch
      %52 = sbr.rel (0) target = $region17
    $region16: #{t5_lm_head.1} parent=1 // pred_region
      %s54 = ssub.s32 16, 16
      %55 = vsyncadd [#allocation10], %s54
      %s57 = sshll.u32 [#allocation9], 4
      %s58 = int_to_ptr.vmem [resolvable:$true] %s57
      %60 = dma.hbm_to_vmem [thread:$0]  %s3, 16, %s58, [#allocation10]
    $region17: #{t5_lm_head.1} parent=1 // pred_fallthru
      _
    // Predicated region
    $region18: #{t5_lm_head.1} parent=1 // pred_check
      _
    $region19: #{t5_lm_head.1} parent=1 // pred_check_branch
      %62 = sbr.rel (0) target = $region21
    $region20: #{t5_lm_head.1} parent=1 // pred_region
      %s64 = ssub.s32 16, 16
      %65 = vsyncadd [#allocation10], %s64
      %s67 = sshll.u32 [#allocation11], 4
      %s68 = int_to_ptr.vmem [resolvable:$true] %s67
      %70 = dma.hbm_to_vmem [thread:$0]  %s4, 16, %s68, [#allocation10]
    $region21: #{t5_lm_head.1} parent=1 // pred_fallthru
      _
    // Predicated region
    $region22: #{t5_lm_head.1} parent=1 // pred_check
      _
    $region23: #{t5_lm_head.1} parent=1 // pred_check_branch
      %72 = sbr.rel (0) target = $region25
    $region24: #{t5_lm_head.1} parent=1 // pred_region
      %s74 = ssub.s32 512, 512
      %75 = vsyncadd [#allocation13], %s74
      %s76 = sshll.u32 [#allocation12], 4
      %s77 = int_to_ptr.vmem [resolvable:$true] %s76
      %82 = dma.hbm_to_vmem [thread:$0]  %s5, 512, %s77, [#allocation13], 128, 128, 8
    $region25: #{t5_lm_head.1} parent=1 // pred_fallthru
      _
    // Predicated region
    $region26: #{t5_lm_head.1} parent=1 // pred_check
      _
    $region27: #{t5_lm_head.1} parent=1 // pred_check_branch
      %84 = sbr.rel (0) target = $region29
    $region28: #{t5_lm_head.1} parent=1 // pred_region
      %s86 = ssub.s32 16, 16
      %87 = vsyncadd [#allocation13], %s86
      %s89 = sshll.u32 [#allocation14], 4
      %s90 = int_to_ptr.vmem [resolvable:$true] %s89
      %92 = dma.hbm_to_vmem [thread:$0]  %s6, 16, %s90, [#allocation13]
    $region29: #{t5_lm_head.1} parent=1 // pred_fallthru
      _
    // Predicated region
    $region30: #{t5_lm_head.1} parent=1 // pred_check
      _
    $region31: #{t5_lm_head.1} parent=1 // pred_check_branch
      %94 = sbr.rel (0) target = $region33
    $region32: #{t5_lm_head.1} parent=1 // pred_region
      %95 = dma.done [#allocation4], 256
    $region33: #{t5_lm_head.1} parent=1 // pred_fallthru
      _
    // Predicated region
    $region34: #{t5_lm_head.1} parent=1 // pred_check
      _
    $region35: #{t5_lm_head.1} parent=1 // pred_check_branch
      %97 = sbr.rel (0) target = $region37
    $region36: #{t5_lm_head.1} parent=1 // pred_region
      %98 = dma.done [#allocation7], 512
    $region37: #{t5_lm_head.1} parent=1 // pred_fallthru
      _
    // Predicated region
    $region38: #{t5_lm_head.1} parent=1 // pred_check
      _
    $region39: #{t5_lm_head.1} parent=1 // pred_check_branch
      %100 = sbr.rel (0) target = $region41
    $region40: #{t5_lm_head.1} parent=1 // pred_region
      %101 = dma.done [#allocation7], 16
    $region41: #{t5_lm_head.1} parent=1 // pred_fallthru
      _
    // Predicated region
    $region42: #{t5_lm_head.1} parent=1 // pred_check
      _
    $region43: #{t5_lm_head.1} parent=1 // pred_check_branch
      %103 = sbr.rel (0) target = $region45
    $region44: #{t5_lm_head.1} parent=1 // pred_region
      %104 = dma.done [#allocation10], 16
    $region45: #{t5_lm_head.1} parent=1 // pred_fallthru
      _
    // Predicated region
    $region46: #{t5_lm_head.1} parent=1 // pred_check
      _
    $region47: #{t5_lm_head.1} parent=1 // pred_check_branch
      %106 = sbr.rel (0) target = $region49
    $region48: #{t5_lm_head.1} parent=1 // pred_region
      %107 = dma.done [#allocation10], 16
    $region49: #{t5_lm_head.1} parent=1 // pred_fallthru
      _
    // Predicated region
    $region50: #{t5_lm_head.1} parent=1 // pred_check
      _
    $region51: #{t5_lm_head.1} parent=1 // pred_check_branch
      %109 = sbr.rel (0) target = $region53
    $region52: #{t5_lm_head.1} parent=1 // pred_region
      %110 = dma.done [#allocation13], 512
    $region53: #{t5_lm_head.1} parent=1 // pred_fallthru
      _
    // Predicated region
    $region54: #{t5_lm_head.1} parent=1 // pred_check
      _
    $region55: #{t5_lm_head.1} parent=1 // pred_check_branch
      %112 = sbr.rel (0) target = $region57
    $region56: #{t5_lm_head.1} parent=1 // pred_region
      %113 = dma.done [#allocation13], 16
    $region57: #{t5_lm_head.1} parent=1 // pred_fallthru
      _
    %p114 = scmp.eq.s32.totalorder 0, 0
    // Predicated region
    $region58: #{t5_lm_head.1} parent=1 // pred_check
      %p115 = pneg %p114
    $region59: #{t5_lm_head.1} parent=1 // pred_check_branch
      %117 = sbr.rel (%p115) target = $region61
    $region60: #{t5_lm_head.1} parent=1 // pred_region
      %v118 = vld [vmem:[#allocation3] sm:$0xff]
      %v119 = vld [vmem:[#allocation3 + $0x8] sm:$0xff]
      %v120 = vld [vmem:[#allocation6] sm:$0xff]
      %v121 = vld [vmem:[#allocation6 + $0x8] sm:$0xff]
      %v122 = vld [vmem:[#allocation6 + $0x10] sm:$0xff]
      %v123 = vld [vmem:[#allocation6 + $0x18] sm:$0xff]
      %v124 = vld [vmem:[#allocation8] sm:$0x1]
      %v126 = vlaneseq
      %v127 = vshrl.u32 %v126, 7
      %v128 = vsub.s32 0, %v127
      %v129 = vrot.slane %v124, %v128
      %vm131 = vcmask 261120
      %v133 = vsel %vm131, %v118, 0
      %v136 = vsel %vm131, %v119, 0
      %138 = vmatprep.subr.mxu0 0.0
      %139 = vmatpush1.msra.mxu0 %v120
      %140 = vmatprep.subr.mxu0 0.0
      %141 = vmatpush1.msra.mxu0 %v121
      %142 = vmatprep.subr.mxu0 0.0
      %143 = vmatpush1.msra.mxu0 %v122
      %144 = vmatprep.subr.mxu0 0.0
      %145 = vmatpush1.msra.mxu0 %v123
      %146 = vmatprep.subr.mxu0 0.0
      %147 = vmatpush1.msra.mxu0 0.0
      %148 = vmatprep.subr.mxu0 0.0
      %149 = vmatpush1.msra.mxu0 0.0
      %150 = vmatprep.subr.mxu0 0.0
      %151 = vmatpush1.msra.mxu0 0.0
      %152 = vmatprep.subr.mxu0 0.0
      %153 = vmatpush1.msra.mxu0 0.0
      %154 = vmatprep.subr.mxu0 0.0
      %155 = vmatpush1.msra.mxu0 0.0
      %156 = vmatprep.subr.mxu0 0.0
      %157 = vmatpush1.msra.mxu0 0.0
      %158 = vmatprep.subr.mxu0 0.0
      %159 = vmatpush1.msra.mxu0 0.0
      %160 = vmatprep.subr.mxu0 0.0
      %161 = vmatpush1.msra.mxu0 0.0
      %162 = vmatprep.subr.mxu0 0.0
      %163 = vmatpush1.msra.mxu0 0.0
      %164 = vmatprep.subr.mxu0 0.0
      %165 = vmatpush1.msra.mxu0 0.0
      %166 = vmatprep.subr.mxu0 0.0
      %167 = vmatpush1.msra.mxu0 0.0
      %168 = vmatprep.subr.mxu0 0.0
      %169 = vmatpush1.msra.mxu0 0.0
      %170 = vmatprep.subr.mxu0 0.0
      %171 = vmatpush1.msra.mxu0 0.0
      %172 = vmatprep.subr.mxu0 0.0
      %173 = vmatpush1.msra.mxu0 0.0
      %174 = vmatprep.subr.mxu0 0.0
      %175 = vmatpush1.msra.mxu0 0.0
      %176 = vmatprep.subr.mxu0 0.0
      %177 = vmatpush1.msra.mxu0 0.0
      %178 = vmatprep.subr.mxu0 0.0
      %179 = vmatpush1.msra.mxu0 0.0
      %180 = vmatprep.subr.mxu0 0.0
      %181 = vmatpush1.msra.mxu0 0.0
      %182 = vmatprep.subr.mxu0 0.0
      %183 = vmatpush1.msra.mxu0 0.0
      %184 = vmatprep.subr.mxu0 0.0
      %185 = vmatpush1.msra.mxu0 0.0
      %186 = vmatprep.subr.mxu0 0.0
      %187 = vmatpush1.msra.mxu0 0.0
      %188 = vmatprep.subr.mxu0 0.0
      %189 = vmatpush1.msra.mxu0 0.0
      %190 = vmatprep.subr.mxu0 0.0
      %191 = vmatpush1.msra.mxu0 0.0
      %192 = vmatprep.subr.mxu0 0.0
      %193 = vmatpush1.msra.mxu0 0.0
      %194 = vmatprep.subr.mxu0 0.0
      %195 = vmatpush1.msra.mxu0 0.0
      %196 = vmatprep.subr.mxu0 0.0
      %197 = vmatpush1.msra.mxu0 0.0
      %198 = vmatprep.subr.mxu0 0.0
      %199 = vmatpush1.msra.mxu0 0.0
      %200 = vmatprep.subr.mxu0 0.0
      %201 = vmatpush1.msra.mxu0 0.0
      %202 = vmatprep.mubr.f32.mxu0 0.0
      %203 = vmatmul.mubr.f32.gmra.mrb[0].mxu0 %v133
      %v204 = vpop.f32.mrb[0].mxu0
      %v205 = vadd.f32 %v129, %v204
      %v206 = vpop.f32.mrb[0].mxu0
      %207 = vmatprep.mubr.f32.mxu0 0.0
      %208 = vmatmul.mubr.f32.gmra.mrb[0].mxu0 %v136
      %v209 = vpop.f32.mrb[0].mxu0
      %v210 = vadd.f32 %v129, %v209
      %v211 = vpop.f32.mrb[0].mxu0
      %212 = vdwg.mxu0
      %v213 = vmul.f32 %v205, 0.5
      %v214 = vmul.f32 %v210, 0.5
      %v215 = vmul.f32 %v205, 0.70710677
      %v216 = vmul.f32 %v210, 0.70710677
      %v217 = verf.f32.pop %v215
      %v218 = verf.f32.pop %v216
      %v219 = vadd.f32 %v217, 1.0
      %v220 = vadd.f32 %v218, 1.0
      %v221 = vmul.f32 %v213, %v219
      %v222 = vmul.f32 %v214, %v220
      %v223 = vsel %vm131, %v221, 0.0
      %224 = vadd.xlane.f32.xlu0 %v223
      %v225 = vpop.xlane.xlu0 %224
      %v226 = vsel %vm131, %v222, 0.0
      %227 = vadd.xlane.f32.xlu0 %v226
      %v228 = vpop.xlane.xlu0 %227
      %v229 = vrcp.pop 32.0
      %v230 = vmul.f32 %v225, %v229
      %v231 = vmul.f32 %v228, %v229
      %v232 = vsub.f32 %v221, %v230
      %v233 = vsub.f32 %v222, %v231
      %v234 = vmul.f32 %v232, %v232
      %v235 = vmul.f32 %v233, %v233
      %v236 = vsel %vm131, %v234, 0.0
      %237 = vadd.xlane.f32.xlu0 %v236
      %v238 = vpop.xlane.xlu0 %237
      %v239 = vsel %vm131, %v235, 0.0
      %240 = vadd.xlane.f32.xlu0 %v239
      %v241 = vpop.xlane.xlu0 %240
      %v242 = vmul.f32 %v238, %v229
      %v243 = vmul.f32 %v241, %v229
      %v244 = vadd.f32 %v242, 1e-06
      %v245 = vadd.f32 %v243, 1e-06
      %v246 = vrsqrt.pop %v244
      %v247 = vrsqrt.pop %v245
      %v248 = vmul.f32 %v232, %v246
      %v249 = vmul.f32 %v233, %v247
      %v250 = vld [vmem:[#allocation9] sm:$0x1]
      %v252 = vlaneseq
      %v253 = vshrl.u32 %v252, 7
      %v254 = vsub.s32 0, %v253
      %v255 = vrot.slane %v250, %v254
      %v257 = vmul.f32 %v248, %v255
      %v258 = vmul.f32 %v249, %v255
      %v259 = vld [vmem:[#allocation11] sm:$0x1]
      %v261 = vlaneseq
      %v262 = vshrl.u32 %v261, 7
      %v263 = vsub.s32 0, %v262
      %v264 = vrot.slane %v259, %v263
      %v266 = vadd.f32 %v257, %v264
      %v267 = vadd.f32 %v258, %v264
      %268 = vst.msk [vmem:[#allocation2] sm:$0xff] %vm131, %v266
      %269 = vst.msk [vmem:[#allocation2 + $0x8] sm:$0xff] %vm131, %v267
    $region61: #{t5_lm_head.1} parent=1 // pred_fallthru
      _
    %v270 = vld [vmem:[#allocation2] sm:$0xff]
    %v271 = vld [vmem:[#allocation2 + $0x8] sm:$0xff]
    %v272 = vld [vmem:[#allocation12] sm:$0xff]
    %v273 = vld [vmem:[#allocation12 + $0x8] sm:$0xff]
    %v274 = vld [vmem:[#allocation12 + $0x10] sm:$0xff]
    %v275 = vld [vmem:[#allocation12 + $0x18] sm:$0xff]
    %v276 = vld [vmem:[#allocation14] sm:$0x1]
    %v278 = vlaneseq
    %v279 = vshrl.u32 %v278, 7
    %v280 = vsub.s32 0, %v279
    %v281 = vrot.slane %v276, %v280
    %vm283 = vcmask 261120
    %v285 = vsel %vm283, %v270, 0
    %v288 = vsel %vm283, %v271, 0
    %290 = vmatprep.subr.mxu0 0.0
    %291 = vmatpush1.msra.mxu0 %v272
    %292 = vmatprep.subr.mxu0 0.0
    %293 = vmatpush1.msra.mxu0 %v273
    %294 = vmatprep.subr.mxu0 0.0
    %295 = vmatpush1.msra.mxu0 %v274
    %296 = vmatprep.subr.mxu0 0.0
    %297 = vmatpush1.msra.mxu0 %v275
    %298 = vmatprep.subr.mxu0 0.0
    %299 = vmatpush1.msra.mxu0 0.0
    %300 = vmatprep.subr.mxu0 0.0
    %301 = vmatpush1.msra.mxu0 0.0
    %302 = vmatprep.subr.mxu0 0.0
    %303 = vmatpush1.msra.mxu0 0.0
    %304 = vmatprep.subr.mxu0 0.0
    %305 = vmatpush1.msra.mxu0 0.0
    %306 = vmatprep.subr.mxu0 0.0
    %307 = vmatpush1.msra.mxu0 0.0
    %308 = vmatprep.subr.mxu0 0.0
    %309 = vmatpush1.msra.mxu0 0.0
    %310 = vmatprep.subr.mxu0 0.0
    %311 = vmatpush1.msra.mxu0 0.0
    %312 = vmatprep.subr.mxu0 0.0
    %313 = vmatpush1.msra.mxu0 0.0
    %314 = vmatprep.subr.mxu0 0.0
    %315 = vmatpush1.msra.mxu0 0.0
    %316 = vmatprep.subr.mxu0 0.0
    %317 = vmatpush1.msra.mxu0 0.0
    %318 = vmatprep.subr.mxu0 0.0
    %319 = vmatpush1.msra.mxu0 0.0
    %320 = vmatprep.subr.mxu0 0.0
    %321 = vmatpush1.msra.mxu0 0.0
    %322 = vmatprep.subr.mxu0 0.0
    %323 = vmatpush1.msra.mxu0 0.0
    %324 = vmatprep.subr.mxu0 0.0
    %325 = vmatpush1.msra.mxu0 0.0
    %326 = vmatprep.subr.mxu0 0.0
    %327 = vmatpush1.msra.mxu0 0.0
    %328 = vmatprep.subr.mxu0 0.0
    %329 = vmatpush1.msra.mxu0 0.0
    %330 = vmatprep.subr.mxu0 0.0
    %331 = vmatpush1.msra.mxu0 0.0
    %332 = vmatprep.subr.mxu0 0.0
    %333 = vmatpush1.msra.mxu0 0.0
    %334 = vmatprep.subr.mxu0 0.0
    %335 = vmatpush1.msra.mxu0 0.0
    %336 = vmatprep.subr.mxu0 0.0
    %337 = vmatpush1.msra.mxu0 0.0
    %338 = vmatprep.subr.mxu0 0.0
    %339 = vmatpush1.msra.mxu0 0.0
    %340 = vmatprep.subr.mxu0 0.0
    %341 = vmatpush1.msra.mxu0 0.0
    %342 = vmatprep.subr.mxu0 0.0
    %343 = vmatpush1.msra.mxu0 0.0
    %344 = vmatprep.subr.mxu0 0.0
    %345 = vmatpush1.msra.mxu0 0.0
    %346 = vmatprep.subr.mxu0 0.0
    %347 = vmatpush1.msra.mxu0 0.0
    %348 = vmatprep.subr.mxu0 0.0
    %349 = vmatpush1.msra.mxu0 0.0
    %350 = vmatprep.subr.mxu0 0.0
    %351 = vmatpush1.msra.mxu0 0.0
    %352 = vmatprep.subr.mxu0 0.0
    %353 = vmatpush1.msra.mxu0 0.0
    %354 = vmatprep.mubr.f32.mxu0 0.0
    %355 = vmatmul.mubr.f32.gmra.mrb[0].mxu0 %v285
    %v356 = vpop.f32.mrb[0].mxu0
    %v357 = vadd.f32 %v281, %v356
    %v358 = vpop.f32.mrb[0].mxu0
    %359 = vmatprep.mubr.f32.mxu0 0.0
    %360 = vmatmul.mubr.f32.gmra.mrb[0].mxu0 %v288
    %v361 = vpop.f32.mrb[0].mxu0
    %v362 = vadd.f32 %v281, %v361
    %v363 = vpop.f32.mrb[0].mxu0
    %364 = vdwg.mxu0
    %365 = vst [vmem:[#allocation15] sm:$0xff] %v357
    %366 = vst [vmem:[#allocation15 + $0x8] sm:$0xff] %v362
    // Predicated region
    $region62: #{t5_lm_head.1} parent=1 // pred_check
      _
    $region63: #{t5_lm_head.1} parent=1 // pred_check_branch
      %368 = sbr.rel (0) target = $region65
    $region64: #{t5_lm_head.1} parent=1 // pred_region
      %s370 = ssub.s32 256, 256
      %371 = vsyncadd [#allocation5], %s370
      %s372 = sshll.u32 [#allocation15], 4
      %s373 = int_to_ptr.vmem [resolvable:$true] %s372
      %378 = dma.vmem_to_hbm [thread:$0]  %s373, 256, %s7, [#allocation5], 128, 128, 8
    $region65: #{t5_lm_head.1} parent=1 // pred_fallthru
      _
    // Predicated region
    $region66: #{t5_lm_head.1} parent=1 // pred_check
      _
    $region67: #{t5_lm_head.1} parent=1 // pred_check_branch
      %380 = sbr.rel (0) target = $region69
    $region68: #{t5_lm_head.1} parent=1 // pred_region
      %381 = dma.done [#allocation5], 256
    $region69: #{t5_lm_head.1} parent=1 // pred_fallthru
      _
    %382 = vsyncpa [#allocation4], 1
    %383 = vsyncpa [#allocation7], 1
    %384 = vsyncpa [#allocation10], 1
    %385 = vsyncpa [#allocation13], 1
    %386 = vsyncpa [#allocation5], 1

</llo_original>
